<compile_context>
chip_gen: v7x
topology: tpu7x:2x2x1
jax: 0.10.0
libtpu: 0.0.40
codegen_flags: <defaults>
</compile_context>

<pallas_src>
import functools
import math

import jax
import jax.numpy as jnp
from jax.experimental import pallas as pl
from jax.experimental.pallas import tpu as pltpu


_MXU = jnp.bfloat16   # MXU operand dtype (accumulation stays f32)


# ------------------------------ helpers --------------------------------------

def _leaky_relu(v, alpha):
    return jnp.where(v > 0, v, alpha * v)


def _vmem_limit_bytes(*bufs):
    """bufs: (shape, dtype, copies) triples.  2x slack + 4 MiB headroom,
    clamped to [32 MiB, 64 MiB] (64 MiB == v7x physical VMEM per core)."""
    total = 0
    for shape, dtype, copies in bufs:
        total += math.prod(shape) * jnp.dtype(dtype).itemsize * copies
    return int(min(max(2 * total + (4 << 20), 32 << 20), 64 << 20))


def _default_tile_rows(n):
    if n % 16 != 0:
        return n                      # fall back to a single full-extent block
    tm = min(n, 256)
    while n % tm:
        tm -= 16
    return tm


# ------------------------------ kernels --------------------------------------

def _linear_act_kernel(x_ref, w_ref, b_ref, h_ref, *, alpha):
    """h = LeakyReLU(x @ W + b); dropout(eval) == identity.  Output bf16."""
    z = jnp.dot(x_ref[...].astype(_MXU), w_ref[...].astype(_MXU),
                preferred_element_type=jnp.float32) + b_ref[...]
    h_ref[...] = _leaky_relu(z, alpha).astype(h_ref.dtype)


def _sage_layer_kernel(adj_ref, h_self_ref, h_full_ref, ws_ref, wn_ref, b_ref,
                       out_ref, *, alpha, final_log_softmax):
    """One mean-aggregator SAGEConv for a (TM, N) row tile of the adjacency.

    out = h_self @ W_self + ((adj @ h_full) * 1/deg) @ W_neigh + b
    followed by LeakyReLU (hidden layer) or log_softmax (final layer).
    """
    f32 = jnp.float32

    adj = adj_ref[...]                                    # (TM, N) bf16, binary
    # degrees of this row tile (exact: 0/1 entries, f32 accumulation)
    deg = jnp.sum(adj.astype(f32), axis=1, keepdims=True)
    inv_deg = pl.reciprocal(jnp.maximum(deg, 1.0), approx=True)

    # mean aggregation: fold 1/deg into the (TM, F) output, never into adj
    neigh = jnp.dot(adj, h_full_ref[...], preferred_element_type=f32) * inv_deg

    z = (jnp.dot(h_self_ref[...], ws_ref[...].astype(_MXU),
                 preferred_element_type=f32)
         + jnp.dot(neigh.astype(_MXU), wn_ref[...].astype(_MXU),
                   preferred_element_type=f32)
         + b_ref[...])

    if final_log_softmax:
        # padded columns carry bias -1e30 -> exp underflows to 0, softmax unaffected
        z = z - jnp.max(z, axis=1, keepdims=True)
        lse = jnp.log(jnp.sum(jnp.exp(z), axis=1, keepdims=True))
        out_ref[...] = (z - lse).astype(out_ref.dtype)
    else:
        out_ref[...] = _leaky_relu(z, alpha).astype(out_ref.dtype)


# ------------------------------ pallas_call wrappers --------------------------

def _linear_act(x, w, b, *, alpha, tm):
    n, nfeat = x.shape
    fout = w.shape[1]
    vmem = _vmem_limit_bytes(((tm, nfeat), x.dtype, 2),
                             ((nfeat, fout), w.dtype, 2),
                             ((1, fout), b.dtype, 2),
                             ((tm, fout), jnp.bfloat16, 2))
    return pl.pallas_call(
        functools.partial(_linear_act_kernel, alpha=alpha),
        out_shape=jax.ShapeDtypeStruct((n, fout), jnp.bfloat16),
        grid=(n // tm,),
        in_specs=[pl.BlockSpec((tm, nfeat), lambda i: (i, 0)),
                  pl.BlockSpec((nfeat, fout), lambda i: (0, 0)),
                  pl.BlockSpec((1, fout), lambda i: (0, 0))],
        out_specs=pl.BlockSpec((tm, fout), lambda i: (i, 0)),
        compiler_params=pltpu.CompilerParams(
            dimension_semantics=("parallel",), vmem_limit_bytes=vmem),
    )(x, w, b)


def _sage_layer(adj_bf16, h_bf16, w_self, w_neigh, b, *, alpha, tm,
                final_log_softmax, out_dtype):
    n = adj_bf16.shape[0]
    fin = h_bf16.shape[1]
    fout = w_self.shape[1]
    vmem = _vmem_limit_bytes(((tm, n), jnp.bfloat16, 2),      # adj row tile
                             ((tm, fin), jnp.bfloat16, 2),    # h self rows
                             ((n, fin), jnp.bfloat16, 2),     # h full (resident)
                             ((fin, fout), jnp.float32, 4),   # W_self + W_neigh
                             ((1, fout), jnp.float32, 2),
                             ((tm, fout), out_dtype, 2))
    return pl.pallas_call(
        functools.partial(_sage_layer_kernel, alpha=alpha,
                          final_log_softmax=final_log_softmax),
        out_shape=jax.ShapeDtypeStruct((n, fout), out_dtype),
        grid=(n // tm,),
        in_specs=[pl.BlockSpec((tm, n), lambda i: (i, 0)),     # adj row tile
                  pl.BlockSpec((tm, fin), lambda i: (i, 0)),   # self rows of h
                  pl.BlockSpec((n, fin), lambda i: (0, 0)),    # full h (no re-DMA)
                  pl.BlockSpec((fin, fout), lambda i: (0, 0)),
                  pl.BlockSpec((fin, fout), lambda i: (0, 0)),
                  pl.BlockSpec((1, fout), lambda i: (0, 0))],
        out_specs=pl.BlockSpec((tm, fout), lambda i: (i, 0)),
        compiler_params=pltpu.CompilerParams(
            dimension_semantics=("parallel",), vmem_limit_bytes=vmem),
    )(adj_bf16, h_bf16, h_bf16, w_self, w_neigh, b)


def graphsage_forward(params, x, adj, edge_index=None, *, alpha=0.2,
                      tile_rows=None):
    """Full GraphSAGE forward (eval mode).  `edge_index` unused (dense adj)."""
    del edge_index
    n = x.shape[0]
    nclass = params["w2_self"].shape[1]

    tm = tile_rows if tile_rows is not None else _default_tile_rows(n)
    if n % tm != 0 or not (tm == n or tm % 16 == 0):
        raise ValueError(f"tile_rows={tm} must divide N={n} and be a multiple "
                         "of 16 (or equal N)")

    # binary adjacency -> bf16 is exact and halves the dominant adj DMA bytes
    adj_bf16 = adj.astype(jnp.bfloat16)

    # layer 0: dense + LeakyReLU (dropout == identity in eval mode)
    h = _linear_act(x, params["lin_w"], params["lin_b"], alpha=alpha, tm=tm)

    # layer 1: mean-SAGE + LeakyReLU (bf16 out, reused as MXU operand by layer 2)
    h1 = _sage_layer(adj_bf16, h, params["w1_self"], params["w1_neigh"],
                     params["b1"], alpha=alpha, tm=tm,
                     final_log_softmax=False, out_dtype=jnp.bfloat16)

    # layer 2: mean-SAGE + log_softmax, lane-dense 128-wide padded logits
    ncols = ((nclass + 127) // 128) * 128
    pad = ncols - nclass
    w2s = jnp.pad(params["w2_self"], ((0, 0), (0, pad)))
    w2n = jnp.pad(params["w2_neigh"], ((0, 0), (0, pad)))
    b2 = jnp.pad(params["b2"], ((0, 0), (0, pad)), constant_values=-1e30)
    out_pad = _sage_layer(adj_bf16, h1, w2s, w2n, b2, alpha=alpha, tm=tm,
                          final_log_softmax=True, out_dtype=jnp.float32)
    return out_pad[:, :nclass]


# --------------------------- pure-JAX reference ------------------------------

def graphsage_reference(params, x, adj, *, alpha=0.2):
    deg = jnp.maximum(jnp.sum(adj, axis=1, keepdims=True), 1.0)
    an = adj / deg
    lrelu = lambda v: jnp.where(v > 0, v, alpha * v)
    h = lrelu(x @ params["lin_w"] + params["lin_b"])
    h1 = lrelu(h @ params["w1_self"] + (an @ h) @ params["w1_neigh"]
               + params["b1"])
    logits = (h1 @ params["w2_self"] + (an @ h1) @ params["w2_neigh"]
              + params["b2"])
    return jax.nn.log_softmax(logits, axis=1)


# ------------------------------ param init -----------------------------------

def init_params(key, nfeat, outfeat, outd_1, nclass):
    def xavier(k, shape):
        fan_in, fan_out = shape
        lim = jnp.sqrt(6.0 / (fan_in + fan_out))
        return jax.random.uniform(k, shape, jnp.float32, -lim, lim)

    ks = jax.random.split(key, 6)
    return {
        "lin_w": xavier(ks[0], (nfeat, outfeat)),
        "lin_b": jax.random.uniform(ks[1], (1, outfeat), jnp.float32, -0.1, 0.1),
        "w1_self": xavier(ks[2], (outfeat, outd_1)),
        "w1_neigh": xavier(ks[3], (outfeat, outd_1)),
        "b1": jnp.zeros((1, outd_1), jnp.float32),
        "w2_self": xavier(ks[4], (outd_1, nclass)),
        "w2_neigh": xavier(ks[5], (outd_1, nclass)),
        "b2": jnp.zeros((1, nclass), jnp.float32),
    }


# --------------------------------- main ---------------------------------------

if __name__ == "__main__":
    # small, forward-consistent shapes; TM=16 -> 4-step row-parallel grid
    N, nfeat, outfeat, outd_1, nclass = 64, 32, 32, 32, 8
    alpha = 0.2   # LeakyReLU slope; dropout is identity in eval mode

    key = jax.random.PRNGKey(0)
    k_x, k_adj, k_p = jax.random.split(key, 3)

    x = jax.random.normal(k_x, (N, nfeat), jnp.float32)

    # random symmetric binary adjacency with self-loops
    a_rnd = jax.random.uniform(k_adj, (N, N))
    adj = (a_rnd < 0.3).astype(jnp.float32)
    adj = jnp.maximum(adj, adj.T)
    adj = jnp.maximum(adj, jnp.eye(N, dtype=jnp.float32))

    params = init_params(k_p, nfeat, outfeat, outd_1, nclass)

    out = graphsage_forward(params, x, adj, alpha=alpha, tile_rows=16)
    out = jax.block_until_ready(out)

    assert out.shape == (N, nclass), out.shape
    assert bool(jnp.all(jnp.isfinite(out)))

    # numerical check vs pure-JAX f32 reference
    # (bf16 MXU operands + bf16 intermediate h/h1 + approx 1/deg -> loose tol)
    ref = graphsage_reference(params, x, adj, alpha=alpha)
    max_err = float(jnp.max(jnp.abs(out - ref)))
    assert max_err < 1e-1, f"max abs error {max_err}"

    print("KERNEL_OK")
</pallas_src>

<mosaic_0001>
module attributes {stable_mosaic.version = 11 : i64} {
  func.func @_linear_act_kernel(%arg0: i32, %arg1: memref<16x32xf32, #tpu.memory_space<vmem>>, %arg2: memref<32x32xf32, #tpu.memory_space<vmem>>, %arg3: memref<1x32xf32, #tpu.memory_space<vmem>>, %arg4: memref<16x32xbf16, #tpu.memory_space<vmem>>) attributes {dimension_semantics = [#tpu.dimension_semantics<parallel>], iteration_bounds = array<i64: 4>, scalar_prefetch = 0 : i64, scratch_operands = 0 : i64, tpu.core_type = #tpu.core_type<tc>, window_params = [{transform_indices = @transform_0, window_bounds = array<i64: 16, 32>}, {pipeline_mode = #tpu.pipeline_mode<synchronous>, transform_indices = @transform_1, window_bounds = array<i64: 32, 32>}, {pipeline_mode = #tpu.pipeline_mode<synchronous>, transform_indices = @transform_2, window_bounds = array<i64: 1, 32>}, {transform_indices = @transform_3, window_bounds = array<i64: 16, 32>}]} {
    %c0 = arith.constant 0 : index
    %c0_0 = arith.constant 0 : index
    %0 = vector.load %arg1[%c0, %c0_0] : memref<16x32xf32, #tpu.memory_space<vmem>>, vector<16x32xf32>
    %1 = arith.truncf %0 : vector<16x32xf32> to vector<16x32xbf16>
    %c0_1 = arith.constant 0 : index
    %c0_2 = arith.constant 0 : index
    %2 = vector.load %arg2[%c0_1, %c0_2] : memref<32x32xf32, #tpu.memory_space<vmem>>, vector<32x32xf32>
    %3 = arith.truncf %2 : vector<32x32xf32> to vector<32x32xbf16>
    %cst = arith.constant dense<0.000000e+00> : vector<16x32xf32>
    %4 = tpu.matmul %1, %3, %cst {dimension_numbers = #tpu.dot_dimension_numbers<[1], [0], [0], [1], [0, 0, 1, 1], [], []>} : vector<16x32xbf16>, vector<32x32xbf16>, vector<16x32xf32> -> vector<16x32xf32>
    %c0_3 = arith.constant 0 : index
    %c0_4 = arith.constant 0 : index
    %5 = vector.load %arg3[%c0_3, %c0_4] : memref<1x32xf32, #tpu.memory_space<vmem>>, vector<1x32xf32>
    %6 = vector.broadcast %5 : vector<1x32xf32> to vector<16x32xf32>
    %7 = arith.addf %4, %6 : vector<16x32xf32>
    %cst_5 = arith.constant 0.000000e+00 : f32
    %8 = vector.broadcast %cst_5 : f32 to vector<16x32xf32>
    %9 = arith.cmpf ogt, %7, %8 : vector<16x32xf32>
    %cst_6 = arith.constant 2.000000e-01 : f32
    %10 = vector.broadcast %cst_6 : f32 to vector<16x32xf32>
    %11 = arith.mulf %10, %7 : vector<16x32xf32>
    %12 = arith.select %9, %7, %11 : vector<16x32xi1>, vector<16x32xf32>
    %13 = arith.truncf %12 : vector<16x32xf32> to vector<16x32xbf16>
    %c0_7 = arith.constant 0 : index
    %c0_8 = arith.constant 0 : index
    %14 = vector.load %arg4[%c0_7, %c0_8] : memref<16x32xbf16, #tpu.memory_space<vmem>>, vector<16x32xbf16>
    tpu.vector_store %arg4[%c0_7, %c0_8], %13 {strides = array<i32>} : memref<16x32xbf16, #tpu.memory_space<vmem>>, vector<16x32xbf16>,
    return
  }
  func.func @transform_0(%arg0: i32) -> (i32, i32) {
    %c0_i32 = arith.constant 0 : i32
    %c0_i32_0 = arith.constant 0 : i32
    return %arg0, %c0_i32 : i32, i32
  }
  func.func @transform_1(%arg0: i32) -> (i32, i32) {
    %c0_i32 = arith.constant 0 : i32
    %c0_i32_0 = arith.constant 0 : i32
    %c0_i32_1 = arith.constant 0 : i32
    return %c0_i32, %c0_i32_0 : i32, i32
  }
  func.func @transform_2(%arg0: i32) -> (i32, i32) {
    %c0_i32 = arith.constant 0 : i32
    %c0_i32_0 = arith.constant 0 : i32
    %c0_i32_1 = arith.constant 0 : i32
    return %c0_i32, %c0_i32_0 : i32, i32
  }
  func.func @transform_3(%arg0: i32) -> (i32, i32) {
    %c0_i32 = arith.constant 0 : i32
    %c0_i32_0 = arith.constant 0 : i32
    return %arg0, %c0_i32 : i32, i32
  }
}

</mosaic_0001>

<llo_original>
// kernel: tpu_custom_call.1
$region0: #{tpu_custom_call.1}
  #allocation0 [shape = 'u32[]', space=smem, size = 0x4, offset = 0x4, fixed_abs, tag = 'smem constant byte address 0x4 - core index']
  #allocation1 [shape = 'u32[144,128]{1,0:T(1,128)}', space=vmem, size = 0x12000, scoped, tag = 'internal scratch']
  %s0 = inlined_call_operand.vmem [shape: f32[64,32], index: 0, kind: input, shape index: {}]
  %s1 = inlined_call_operand.vmem [shape: f32[32,32], index: 1, kind: input, shape index: {}]
  %s2 = inlined_call_operand.vmem [shape: f32[1,32], index: 2, kind: input, shape index: {}]
  %s3 = inlined_call_operand.vmem [shape: bf16[64,32], index: 3, kind: output, shape index: {}]
  %s4 = sld [smem:[#allocation0]]
  $region45: #{tpu_custom_call.1} parent=0
    _
  %s6 = ssub.s32 1, %s4
  %s7 = scalar_select 0, %s6, %s4
  loop: start=0, step=1, limit=6
  $region2: #{tpu_custom_call.1} parent=0 // loop_pre_header
    _
  $region3: #{tpu_custom_call.1} parent=0 // loop_header
    %s9 = sphi 0, %s13
    %p10 = scmp.ge.s32.totalorder %s9, 6
    %s19 = sphi 0, %s21
    %s22 = sphi 0, %s19
    %s23 = sphi 0, %s22
    %s39 = sphi 0, %s23
    %s43 = sphi 0, %s43
    %s45 = sphi 0, %s43
    %s46 = sphi 0, %s45
    %s60 = sphi 0, %s46
    %s64 = sphi 0, %s64
    %s66 = sphi 0, %s64
    %s67 = sphi 0, %s66
    %s81 = sphi 0, %s67
    %s87 = sphi 0, %s89
    %s90 = sphi 0, %s87
    %s91 = sphi 0, %s90
    %s107 = sphi 0, %s91
  $region4: #{tpu_custom_call.1} parent=0 // loop_header_branch
    %12 = sbr.rel (%p10) target = $region8
  $region5: #{tpu_custom_call.1} parent=0 // loop_body
    %s14 = ssub.s32 %s9, 1
    %s15 = ssub.s32 %s9, 2
    %s16 = sadd.s32 %s9, 1
    %s17 = ssub.s32 %s9, %s16
    %p18 = scmp.eq.s32.totalorder %s17, 0
    %s20 = sadd.s32 %s19, 1
    %s21 = scalar_select %p18, %s19, %s20
    %p24 = pneg %p18
    %p25 = scmp.eq.s32.totalorder %s9, 3
    %p26 = por %p24, %p25
    %p27 = scmp.ne.s32.totalorder %s19, %s22
    %p28 = scmp.eq.s32.totalorder %s9, 0
    %p29 = por %p27, %p28
    %p30 = scmp.ne.s32.totalorder %s19, %s22
    %p31 = scmp.eq.s32.totalorder %s14, 3
    %p32 = por %p30, %p31
    %p33 = scmp.ne.s32.totalorder %s22, %s23
    %p34 = scmp.eq.s32.totalorder %s14, 0
    %p35 = por %p33, %p34
    %p36 = scmp.ne.s32.totalorder %s22, %s23
    %p37 = scmp.eq.s32.totalorder %s15, 3
    %p38 = por %p36, %p37
    %p40 = scmp.ne.s32.totalorder %s23, %s39
    %p41 = scmp.eq.s32.totalorder %s15, 0
    %p42 = por %p40, %p41
    %s44 = sadd.s32 %s43, 1
    %p47 = scmp.eq.s32.totalorder %s9, 3
    %p48 = scmp.ne.s32.totalorder %s43, %s45
    %p49 = scmp.eq.s32.totalorder %s9, 0
    %p50 = por %p48, %p49
    %p51 = scmp.ne.s32.totalorder %s43, %s45
    %p52 = scmp.eq.s32.totalorder %s14, 3
    %p53 = por %p51, %p52
    %p54 = scmp.ne.s32.totalorder %s45, %s46
    %p55 = scmp.eq.s32.totalorder %s14, 0
    %p56 = por %p54, %p55
    %p57 = scmp.ne.s32.totalorder %s45, %s46
    %p58 = scmp.eq.s32.totalorder %s15, 3
    %p59 = por %p57, %p58
    %p61 = scmp.ne.s32.totalorder %s46, %s60
    %p62 = scmp.eq.s32.totalorder %s15, 0
    %p63 = por %p61, %p62
    %s65 = sadd.s32 %s64, 1
    %p68 = scmp.eq.s32.totalorder %s9, 3
    %p69 = scmp.ne.s32.totalorder %s64, %s66
    %p70 = scmp.eq.s32.totalorder %s9, 0
    %p71 = por %p69, %p70
    %p72 = scmp.ne.s32.totalorder %s64, %s66
    %p73 = scmp.eq.s32.totalorder %s14, 3
    %p74 = por %p72, %p73
    %p75 = scmp.ne.s32.totalorder %s66, %s67
    %p76 = scmp.eq.s32.totalorder %s14, 0
    %p77 = por %p75, %p76
    %p78 = scmp.ne.s32.totalorder %s66, %s67
    %p79 = scmp.eq.s32.totalorder %s15, 3
    %p80 = por %p78, %p79
    %p82 = scmp.ne.s32.totalorder %s67, %s81
    %p83 = scmp.eq.s32.totalorder %s15, 0
    %p84 = por %p82, %p83
    %s85 = ssub.s32 %s9, %s16
    %p86 = scmp.eq.s32.totalorder %s85, 0
    %s88 = sadd.s32 %s87, 1
    %s89 = scalar_select %p86, %s87, %s88
    %p92 = pneg %p86
    %p93 = scmp.eq.s32.totalorder %s9, 3
    %p94 = por %p92, %p93
    %p95 = scmp.ne.s32.totalorder %s87, %s90
    %p96 = scmp.eq.s32.totalorder %s9, 0
    %p97 = por %p95, %p96
    %p98 = scmp.ne.s32.totalorder %s87, %s90
    %p99 = scmp.eq.s32.totalorder %s14, 3
    %p100 = por %p98, %p99
    %p101 = scmp.ne.s32.totalorder %s90, %s91
    %p102 = scmp.eq.s32.totalorder %s14, 0
    %p103 = por %p101, %p102
    %p104 = scmp.ne.s32.totalorder %s90, %s91
    %p105 = scmp.eq.s32.totalorder %s15, 3
    %p106 = por %p104, %p105
    %p108 = scmp.ne.s32.totalorder %s91, %s107
    %p109 = scmp.eq.s32.totalorder %s15, 0
    %p110 = por %p108, %p109
    %p111 = scmp.le.s32.totalorder 1, %s9
    %p112 = scmp.lt.s32.totalorder %s9, 5
    %p113 = pnand %p111, %p112
    %p114 = pneg %p113
    // Predicated region
    $region9: #{tpu_custom_call.1} parent=5 // pred_check
      _
    $region10: #{tpu_custom_call.1} parent=5 // pred_check_branch
      %116 = sbr.rel (%p113) target = $region12
    $region11: #{tpu_custom_call.1} parent=5 // pred_region
      %s117 = ssub.s32 %s9, 1
      // Predicated region
      $region13: #{tpu_custom_call.1} parent=11 // pred_check
        %p118 = pneg %p56
      $region14: #{tpu_custom_call.1} parent=11 // pred_check_branch
        %120 = sbr.rel (%p118) target = $region16
      $region15: #{tpu_custom_call.1} parent=11 // pred_region
        _
      $region16: #{tpu_custom_call.1} parent=11 // pred_fallthru
        _
      // Predicated region
      $region17: #{tpu_custom_call.1} parent=11 // pred_check
        %p121 = pneg %p77
      $region18: #{tpu_custom_call.1} parent=11 // pred_check_branch
        %123 = sbr.rel (%p121) target = $region20
      $region19: #{tpu_custom_call.1} parent=11 // pred_region
        _
      $region20: #{tpu_custom_call.1} parent=11 // pred_fallthru
        _
    $region12: #{tpu_custom_call.1} parent=5 // pred_fallthru
      _
    %p124 = scmp.lt.s32.totalorder %s9, 4
    // Predicated region
    $region21: #{tpu_custom_call.1} parent=5 // pred_check
      %p125 = pneg %p124
    $region22: #{tpu_custom_call.1} parent=5 // pred_check_branch
      %127 = sbr.rel (%p125) target = $region24
    $region23: #{tpu_custom_call.1} parent=5 // pred_region
      // Predicated region
      $region25: #{tpu_custom_call.1} parent=23 // pred_check
        %p128 = pneg %p29
      $region26: #{tpu_custom_call.1} parent=23 // pred_check_branch
        %130 = sbr.rel (%p128) target = $region28
      $region27: #{tpu_custom_call.1} parent=23 // pred_region
        %s131 = smul.u32 2, %s9
        %p132 = scmp.lt.s32.totalorder %s131, 7
        %s133 = scalar_select %p132, %s131, 7
        %s134 = smul.addr %s133, 8
        %s135 = scalar_lea.vmem %s0, %s134
        %s136 = smul.u32 2, %s9
      $region28: #{tpu_custom_call.1} parent=23 // pred_fallthru
        _
    $region24: #{tpu_custom_call.1} parent=5 // pred_fallthru
      _
    %p137 = scmp.le.s32.totalorder 1, %s9
    %p138 = scmp.lt.s32.totalorder %s9, 5
    %p139 = pnand %p137, %p138
    %p140 = pneg %p139
    // Predicated region
    $region29: #{tpu_custom_call.1} parent=5 // pred_check
      _
    $region30: #{tpu_custom_call.1} parent=5 // pred_check_branch
      %142 = sbr.rel (%p139) target = $region32
    $region31: #{tpu_custom_call.1} parent=5 // pred_region
      %s143 = ssub.s32 %s9, 1
      %s144 = smul.u32 2, %s14
      %p145 = scmp.lt.s32.totalorder %s144, 7
      %s146 = scalar_select %p145, %s144, 7
      %s147 = smul.addr %s146, 8
      %s148 = scalar_lea.vmem %s0, %s147
      %p149 = pneg %p35
      %p150 = pneg %p32
      %p151 = pneg %p56
      %p152 = pneg %p53
      %p153 = pneg %p77
      %p154 = pneg %p74
      %p155 = pneg %p103
      %p156 = pneg %p100
      %s157 = smul.u32 2, %s14
      %p158 = scmp.lt.s32.totalorder %s157, 7
      %s159 = scalar_select %p158, %s157, 7
      %s160 = smul.addr %s159, 4
      %s161 = scalar_lea.vmem %s3, %s160
      %s162 = smul.u32 2, %s14
      %p163 = scmp.lt.s32.totalorder %s162, 7
      %s164 = scalar_select %p163, %s162, 7
      %s165 = smul.addr %s164, 8
      %s166 = scalar_lea.vmem %s0, %s165
      %s167 = smul.u32 2, %s14
      %s168 = smul.u32 2, %s14
      %p169 = scmp.lt.s32.totalorder %s168, 7
      %s170 = scalar_select %p169, %s168, 7
      %s171 = smul.addr %s170, 4
      %s172 = scalar_lea.vmem %s3, %s171
      %s173 = smul.u32 2, %s14
      %v175 = vld [vmem:[%s166] sm:$0xff]
      %v176 = vld [vmem:[%s166 + $0x8] sm:$0xff]
      %v177 = vpack.c.bf16 %v176, %v175
      %v178 = vld [vmem:[%s1] sm:$0xff]
      %v179 = vld [vmem:[%s1 + $0x8] sm:$0xff]
      %v180 = vld [vmem:[%s1 + $0x10] sm:$0xff]
      %v181 = vld [vmem:[%s1 + $0x18] sm:$0xff]
      %v182 = vpack.c.bf16 %v179, %v178
      %v183 = vpack.c.bf16 %v181, %v180
      %v184 = vld [vmem:[%s2] sm:$0x1]
      %v186 = vlaneseq
      %v187 = vshrl.u32 %v186, 7
      %v188 = vsub.s32 0, %v187
      %v189 = vrot.slane %v184, %v188
      %vm191 = vcmask 261120
      %v193 = vsel %vm191, %v177, 0
      %195 = vmatprep.subr.bf16.mxu0 0
      %196 = vmatpush1.bf16.msra.mxu0 %v182
      %197 = vmatprep.subr.bf16.mxu0 0
      %198 = vmatpush1.bf16.msra.mxu0 %v183
      %199 = vmatprep.subr.bf16.mxu0 0
      %200 = vmatpush1.bf16.msra.mxu0 0
      %201 = vmatprep.subr.bf16.mxu0 0
      %202 = vmatpush1.bf16.msra.mxu0 0
      %203 = vmatprep.subr.bf16.mxu0 0
      %204 = vmatpush1.bf16.msra.mxu0 0
      %205 = vmatprep.subr.bf16.mxu0 0
      %206 = vmatpush1.bf16.msra.mxu0 0
      %207 = vmatprep.subr.bf16.mxu0 0
      %208 = vmatpush1.bf16.msra.mxu0 0
      %209 = vmatprep.subr.bf16.mxu0 0
      %210 = vmatpush1.bf16.msra.mxu0 0
      %211 = vmatprep.subr.bf16.mxu0 0
      %212 = vmatpush1.bf16.msra.mxu0 0
      %213 = vmatprep.subr.bf16.mxu0 0
      %214 = vmatpush1.bf16.msra.mxu0 0
      %215 = vmatprep.subr.bf16.mxu0 0
      %216 = vmatpush1.bf16.msra.mxu0 0
      %217 = vmatprep.subr.bf16.mxu0 0
      %218 = vmatpush1.bf16.msra.mxu0 0
      %219 = vmatprep.subr.bf16.mxu0 0
      %220 = vmatpush1.bf16.msra.mxu0 0
      %221 = vmatprep.subr.bf16.mxu0 0
      %222 = vmatpush1.bf16.msra.mxu0 0
      %223 = vmatprep.subr.bf16.mxu0 0
      %224 = vmatpush1.bf16.msra.mxu0 0
      %225 = vmatprep.subr.bf16.mxu0 0
      %226 = vmatpush1.bf16.msra.mxu0 0
      %227 = vmatprep.mubr.bf16.mxu0 0
      %228 = vmatmul.mubr.bf16.gmra.mrb[0].mxu0 %v193
      %v229 = vpop.f32.mrb[0].mxu0
      %v230 = vadd.f32 %v189, %v229
      %v231 = vpop.f32.mrb[0].mxu0
      %v232 = vpop.f32.mrb[0].mxu0
      %v233 = vadd.f32 %v189, %v232
      %v234 = vpop.f32.mrb[0].mxu0
      %235 = vdwg.mxu0
      %vm236 = vcmp.gt.f32.partialorder %v230, 0.0
      %vm237 = vcmp.gt.f32.partialorder %v233, 0.0
      %v238 = vmul.f32 %v230, 0.2
      %v239 = vmul.f32 %v233, 0.2
      %v240 = vsel %vm236, %v230, %v238
      %v241 = vsel %vm237, %v233, %v239
      %v242 = vpack.c.bf16 %v241, %v240
      %v244 = vunpack.c.l.b16 %v242
      %v245 = vunpack.c.h.b16 %v242
      %v246 = vpack.c.b16 %v244, %v244
      %v247 = vpack.c.b16 %v245, %v245
      %vm250 = vcmask 257024
      %251 = vst.msk [vmem:[%s172] sm:$0xf] %vm250, %v246
      %252 = vst.msk [vmem:[%s172 + $0x4] sm:$0xf] %vm250, %v247
      %s253 = smul.u32 2, %s14
      %p254 = scmp.lt.s32.totalorder %s253, 7
      %s255 = scalar_select %p254, %s253, 7
      %s256 = smul.addr %s255, 4
      %s257 = scalar_lea.vmem %s3, %s256
      // Predicated region
      $region33: #{tpu_custom_call.1} parent=31 // pred_check
        %p258 = pneg %p100
      $region34: #{tpu_custom_call.1} parent=31 // pred_check_branch
        %260 = sbr.rel (%p258) target = $region36
      $region35: #{tpu_custom_call.1} parent=31 // pred_region
        %s261 = smul.u32 2, %s14
      $region36: #{tpu_custom_call.1} parent=31 // pred_fallthru
        _
    $region32: #{tpu_custom_call.1} parent=5 // pred_fallthru
      _
    %p262 = scmp.le.s32.totalorder 2, %s9
    // Predicated region
    $region37: #{tpu_custom_call.1} parent=5 // pred_check
      %p263 = pneg %p262
    $region38: #{tpu_custom_call.1} parent=5 // pred_check_branch
      %265 = sbr.rel (%p263) target = $region40
    $region39: #{tpu_custom_call.1} parent=5 // pred_region
      %s266 = ssub.s32 %s9, 2
      // Predicated region
      $region41: #{tpu_custom_call.1} parent=39 // pred_check
        %p267 = pneg %p106
      $region42: #{tpu_custom_call.1} parent=39 // pred_check_branch
        %269 = sbr.rel (%p267) target = $region44
      $region43: #{tpu_custom_call.1} parent=39 // pred_region
        %s270 = smul.u32 2, %s15
        %p271 = scmp.lt.s32.totalorder %s270, 7
        %s272 = scalar_select %p271, %s270, 7
        %s273 = smul.addr %s272, 4
        %s274 = scalar_lea.vmem %s3, %s273
      $region44: #{tpu_custom_call.1} parent=39 // pred_fallthru
        _
    $region40: #{tpu_custom_call.1} parent=5 // pred_fallthru
      _
  $region6: #{tpu_custom_call.1} parent=0 // loop_footer
    %s13 = sadd.s32 1, %s9
  $region7: #{tpu_custom_call.1} parent=0 // loop_footer_branch
    %8 = sbr.rel target = $region3
  $region8: #{tpu_custom_call.1} parent=0 // loop_exit
    _

</llo_original>
